<compile_context>
chip_gen: v5e
topology: v5e:2x2
jax: 0.10.0
libtpu: 0.0.40
codegen_flags: <defaults>
</compile_context>

<pallas_src>
import functools

import numpy as np
import jax
import jax.numpy as jnp
from jax.experimental import pallas as pl
from jax.experimental.pallas import tpu as pltpu


# ---------------------------------------------------------------------------
# Kernels
# ---------------------------------------------------------------------------

def _gemm_kernel_single(tile_group_ref, x_ref, w_ref, b_ref, o_ref):
    """Full-K path: single dot + bias + cast (no scratch, no predication)."""
    del tile_group_ref  # only used in the index_maps
    y = jnp.dot(x_ref[...], w_ref[...], preferred_element_type=jnp.float32)
    o_ref[...] = (y + b_ref[...].astype(jnp.float32)).astype(o_ref.dtype)


def _gemm_kernel_kloop(tile_group_ref, x_ref, w_ref, b_ref, o_ref, acc_ref):
    """K-tiled path: f32 VMEM accumulator over the (last, 'arbitrary') K axis.
    First K step assigns (no zero-fill + read-modify-write)."""
    del tile_group_ref  # only used in the index_maps
    k = pl.program_id(2)
    part = jnp.dot(x_ref[...], w_ref[...], preferred_element_type=jnp.float32)

    @pl.when(k == 0)
    def _():
        acc_ref[...] = part

    @pl.when(k > 0)
    def _():
        acc_ref[...] += part

    @pl.when(k == pl.num_programs(2) - 1)
    def _():
        o_ref[...] = (acc_ref[...] + b_ref[...].astype(jnp.float32)).astype(o_ref.dtype)


# ---------------------------------------------------------------------------
# Generation detection & tile tables
# ---------------------------------------------------------------------------

_TILE_TABLE = {
    #            tm_cap  tn_cap  tk_cap  vmem_mb  w_buffers  align
    "v5e":     dict(tm_cap=512,  tn_cap=512,  tk_cap=512,  vmem_mb=64,  w_buffers=2, align=128),
    "v6e":     dict(tm_cap=1024, tn_cap=2048, tk_cap=1024, vmem_mb=100, w_buffers=2, align=256),
    "v7x":     dict(tm_cap=512,  tn_cap=1024, tk_cap=512,  vmem_mb=44,  w_buffers=3, align=256),
    "default": dict(tm_cap=512,  tn_cap=512,  tk_cap=512,  vmem_mb=32,  w_buffers=2, align=128),
}


def _tpu_generation():
    try:
        kind = jax.devices()[0].device_kind.lower()
    except Exception:
        return "default"
    if "v7" in kind:
        return "v7x"
    if "v6" in kind:
        return "v6e"
    if "v5e" in kind or "v5 lite" in kind or "v5lite" in kind:
        return "v5e"
    return "default"


# ---------------------------------------------------------------------------
# Tiling helpers
# ---------------------------------------------------------------------------

def _round_up(x, m):
    return ((x + m - 1) // m) * m


def _pick_tm(m_max, cap, align):
    """Bucketed M tile: powers of two below `align`, multiples of `align` above
    (keeps the MXU rows full on 256-wide generations and bounds recompiles)."""
    if m_max >= align:
        return min(_round_up(m_max, align), cap)
    t = 8
    while t < m_max:
        t *= 2
    return min(t, cap)


def _dim_tile_candidates(D, cap):
    """Descending tile candidates for dim D: full-D (if <= cap) and every
    multiple of 128 that divides D, down to 128.  Full-D fallback for odd D."""
    cands = []
    if D <= cap:
        cands.append(D)
    t = min(cap, (D // 128) * 128)
    while t >= 128:
        if D % t == 0 and t not in cands:
            cands.append(t)
        t -= 128
    if not cands:
        cands.append(D)   # odd small/large dim: full-dim block (always legal)
    return cands


def _vmem_bytes(tm, tn, tk, k_tiles, w_buffers, esize):
    b = 2 * tm * tk * esize            # x tile, double buffered
    b += w_buffers * tk * tn * esize   # weight tile, 2- or 3-deep pipeline
    b += 2 * tn * esize                # bias tile
    b += 2 * tm * tn * esize           # output tile
    if k_tiles > 1:
        b += tm * tn * 4               # f32 accumulator scratch
    return b


def _select_tiles(m_max, K, N, gen, esize):
    p = _TILE_TABLE.get(gen, _TILE_TABLE["default"])
    budget = max((p["vmem_mb"] - 12) << 20, (p["vmem_mb"] * 3 // 4) << 20)
    tm = _pick_tm(m_max, p["tm_cap"], p["align"])
    n_cands = _dim_tile_candidates(N, p["tn_cap"])
    # Prefer full-K (no accumulator / no K grid axis) whenever it fits VMEM.
    k_cands = [K] + [t for t in _dim_tile_candidates(K, p["tk_cap"]) if t != K]
    for tn in n_cands:                 # maximize tn first (drives AI), then tk
        for tk in k_cands:
            k_tiles = K // tk if K % tk == 0 else 1
            if _vmem_bytes(tm, tn, tk, k_tiles, p["w_buffers"], esize) <= budget:
                return tm, tn, tk
    # TODO(synk): a pl.cdiv grid with a masked last tile would allow finer
    # tiling for odd K/N; fall back to the smallest legal candidates.
    return tm, n_cands[-1], k_cands[-1]


def _bucket_tiles(t):
    """Bucket the total m-tile count to {1,2,3,4,8,16,...} to cap recompiles."""
    if t <= 4:
        return max(t, 1)
    b = 4
    while b < t:
        b *= 2
    return b


# ---------------------------------------------------------------------------
# pallas_call wrapper (pad + concat + grouped GEMM, all inside one jit)
# ---------------------------------------------------------------------------

@functools.partial(
    jax.jit,
    static_argnames=("tm", "tn", "tk", "total_tiles", "vmem_limit_mb", "w_buffers"))
def _grouped_linear_pallas(tile_group, weight_t, bias3, xs_2d, *, tm, tn, tk,
                           total_tiles, vmem_limit_mb, w_buffers):
    """tile_group: (total_tiles,) int32 group id per m tile (scalar prefetch),
    weight_t: (G, K, N) pre-transposed, bias3: (G, 1, N),
    xs_2d: tuple of per-group (m_j, K) activations -> (total_tiles*tm, N)."""
    G, K, N = weight_t.shape
    Mp = total_tiles * tm

    # Pad each group to a multiple of tm and concatenate (single activation
    # buffer; at most tm-1 wasted rows per group + bucket-pad tiles).
    padded = [jnp.pad(x, ((0, (-x.shape[0]) % tm), (0, 0))) for x in xs_2d]
    x_cat = jnp.concatenate(padded, axis=0)
    if x_cat.shape[0] < Mp:
        x_cat = jnp.pad(x_cat, ((0, Mp - x_cat.shape[0]), (0, 0)))

    n_tiles = N // tn
    w_kwargs = {}
    if w_buffers != 2 and hasattr(pl, "Buffered"):
        # v7x: deeper weight pipeline to hide the (tk, tn) DMA (largest xfer).
        w_kwargs["pipeline_mode"] = pl.Buffered(w_buffers)

    out_shape = jax.ShapeDtypeStruct((Mp, N), x_cat.dtype)

    if tk == K:
        # Full-K specialization: no accumulator, no K grid axis.
        grid = (total_tiles, n_tiles)
        in_specs = [
            pl.BlockSpec((tm, K), lambda mi, ni, tg: (mi, 0)),                       # x
            pl.BlockSpec((None, K, tn), lambda mi, ni, tg: (tg[mi], 0, ni),
                         **w_kwargs),                                                # weight_t
            pl.BlockSpec((None, 1, tn), lambda mi, ni, tg: (tg[mi], 0, ni)),         # bias
        ]
        out_spec = pl.BlockSpec((tm, tn), lambda mi, ni, tg: (mi, ni))
        kernel = _gemm_kernel_single
        scratch = []
        dims = ("parallel", "parallel")
    else:
        k_tiles = K // tk
        grid = (total_tiles, n_tiles, k_tiles)
        in_specs = [
            pl.BlockSpec((tm, tk), lambda mi, ni, ki, tg: (mi, ki)),                 # x
            pl.BlockSpec((None, tk, tn), lambda mi, ni, ki, tg: (tg[mi], ki, ni),
                         **w_kwargs),                                                # weight_t
            pl.BlockSpec((None, 1, tn), lambda mi, ni, ki, tg: (tg[mi], 0, ni)),     # bias
        ]
        out_spec = pl.BlockSpec((tm, tn), lambda mi, ni, ki, tg: (mi, ni))
        kernel = _gemm_kernel_kloop
        scratch = [pltpu.VMEM((tm, tn), jnp.float32)]
        dims = ("parallel", "parallel", "arbitrary")

    return pl.pallas_call(
        kernel,
        out_shape=out_shape,
        grid_spec=pltpu.PrefetchScalarGridSpec(
            num_scalar_prefetch=1,
            grid=grid,
            in_specs=in_specs,
            out_specs=out_spec,
            scratch_shapes=scratch,
        ),
        compiler_params=pltpu.CompilerParams(
            dimension_semantics=dims,
            vmem_limit_bytes=vmem_limit_mb << 20),
    )(tile_group, x_cat, weight_t, bias3)


# ---------------------------------------------------------------------------
# Module
# ---------------------------------------------------------------------------

class GroupColumnParallelLinearDeepSeekV3:
    """JAX/Pallas port of the torch module (tp_size=1, bf16 weights)."""

    def __init__(self, group_size, in_features, out_features, has_bias=True,
                 gather_output=True, dtype=jnp.bfloat16, key=None,
                 tile_overrides=None):
        self.group_size = group_size
        self.in_features = in_features
        self.out_features = out_features
        self.tp_size = 1  # single-device: gather_output path is a no-op
        self.local_out_features = out_features // self.tp_size

        key = key if key is not None else jax.random.PRNGKey(0)
        kw, kb = jax.random.split(key)
        # Torch-layout parameter (G, N, K); kept for the reference check.
        self.weight = (jax.random.normal(
            kw, (group_size, self.local_out_features, in_features), jnp.float32
        ) * 0.02).astype(dtype)
        # One-time pre-transpose to (G, K, N): the layout the kernel consumes.
        self.weight_t = jnp.transpose(self.weight, (0, 2, 1))

        if has_bias:
            self.bias = (jax.random.normal(
                kb, (group_size, self.local_out_features), jnp.float32
            ) * 0.02).astype(dtype)
        else:
            # TODO(synk): bias-less variant still streams/adds a zero bias tile
            # (tn*2 B per step) to keep a single kernel; negligible cost.
            self.bias = jnp.zeros((group_size, self.local_out_features), dtype)
        self.bias3 = self.bias.reshape(group_size, 1, self.local_out_features)

        # dtype.itemsize > 1 -> no fp8 scale parameter (self.scale = None)
        self.scale = None

        self._gen = _tpu_generation()
        self._params = _TILE_TABLE.get(self._gen, _TILE_TABLE["default"])
        self._tile_overrides = dict(tile_overrides or {})

    def __call__(self, xs):
        assert len(xs) == self.group_size
        ys = [None] * self.group_size
        work = []
        for i, x in enumerate(xs):
            if x is None:
                continue
            lead = x.shape[:-1]
            x2 = x.reshape(-1, self.in_features)
            if x2.shape[0] == 0:
                ys[i] = jnp.zeros(lead + (self.out_features,), x.dtype)
            else:
                work.append((i, lead, x2))
        if not work:
            return ys

        ms = [x2.shape[0] for _, _, x2 in work]
        m_max = max(ms)
        esize = self.weight_t.dtype.itemsize

        tm, tn, tk = _select_tiles(m_max, self.in_features,
                                   self.local_out_features, self._gen, esize)

        tiles_per_group = [-(-m // tm) for m in ms]
        total_tiles_b = _bucket_tiles(sum(tiles_per_group))

        # v7x megacore occupancy: make sure there are >= 2 parallel tiles.
        if (self._gen == "v7x"
                and total_tiles_b * (self.local_out_features // tn) < 2
                and tn >= 256 and tn % 256 == 0):
            tn //= 2

        # Test / expert overrides (applied last).
        tm = self._tile_overrides.get("tm", tm)
        tn = self._tile_overrides.get("tn", tn)
        tk = self._tile_overrides.get("tk", tk)
        if "tm" in self._tile_overrides:
            tiles_per_group = [-(-m // tm) for m in ms]
            total_tiles_b = _bucket_tiles(sum(tiles_per_group))

        # Per-group row offsets in the concatenated/padded buffer.
        offsets = []
        off = 0
        for t in tiles_per_group:
            offsets.append(off)
            off += t * tm

        # Per-m-tile group ids (original group index into weight/bias).
        tile_group = np.empty((total_tiles_b,), np.int32)
        pos = 0
        for (i, _, _), t in zip(work, tiles_per_group):
            tile_group[pos:pos + t] = i
            pos += t
        tile_group[pos:] = work[-1][0]   # bucket-pad tiles: any valid group

        y = _grouped_linear_pallas(
            jnp.asarray(tile_group), self.weight_t, self.bias3,
            tuple(x2 for _, _, x2 in work),
            tm=tm, tn=tn, tk=tk, total_tiles=total_tiles_b,
            vmem_limit_mb=self._params["vmem_mb"],
            w_buffers=self._params["w_buffers"])

        for (i, lead, _), m, off in zip(work, ms, offsets):
            ys[i] = y[off:off + m].reshape(lead + (self.out_features,))
        # TODO(synk): tp_size > 1 all_gather_into_tensor (gather_output) path
        # not modeled — single-device simulation where it is the identity.
        return ys


# ---------------------------------------------------------------------------
# Demo / correctness check
# ---------------------------------------------------------------------------

def _reference(x, w_nk, b):
    """Plain-JAX reference: y = x @ W.T + b, f32 accumulation, bf16 cast."""
    x2 = x.reshape(-1, w_nk.shape[-1]).astype(jnp.float32)
    y = jnp.dot(x2, w_nk.astype(jnp.float32).T) + b.astype(jnp.float32)
    return y.astype(jnp.bfloat16).reshape(*x.shape[:-1], w_nk.shape[0])


if __name__ == "__main__":
    key = jax.random.PRNGKey(0)
    ok = True

    # --- Test 1: full-K specialized path, small shapes -----------------------
    k_mod, k_x0, k_x1, key = jax.random.split(key, 4)
    g1, seq, K1, N1 = 2, 8, 256, 128
    mod1 = GroupColumnParallelLinearDeepSeekV3(g1, K1, N1, has_bias=True, key=k_mod)
    x0 = jax.random.normal(k_x0, (seq, K1), jnp.float32).astype(jnp.bfloat16)
    x1 = jax.random.normal(k_x1, (seq, K1), jnp.float32).astype(jnp.bfloat16)
    xs1 = [x0, x1]
    ys1 = [jax.block_until_ready(y) for y in mod1(xs1)]
    for g in range(g1):
        ref = _reference(xs1[g], mod1.weight[g], mod1.bias[g])
        assert ys1[g].shape == (seq, N1) and ys1[g].dtype == jnp.bfloat16
        ok &= bool(jnp.allclose(ys1[g].astype(jnp.float32),
                                ref.astype(jnp.float32), atol=2e-2, rtol=2e-2))

    # --- Test 2: ragged M, a None group, 3-D leading shape -------------------
    k_mod2, k_a, k_b, key = jax.random.split(key, 4)
    g2, K2, N2 = 3, 1024, 256
    mod2 = GroupColumnParallelLinearDeepSeekV3(g2, K2, N2, has_bias=True, key=k_mod2)
    xa = jax.random.normal(k_a, (2, 32, K2), jnp.float32).astype(jnp.bfloat16)
    xb = jax.random.normal(k_b, (40, K2), jnp.float32).astype(jnp.bfloat16)
    xs2 = [xa, None, xb]
    ys2 = [y if y is None else jax.block_until_ready(y) for y in mod2(xs2)]
    assert ys2[1] is None
    for g in (0, 2):
        ref = _reference(xs2[g], mod2.weight[g], mod2.bias[g])
        assert ys2[g].shape == xs2[g].shape[:-1] + (N2,)
        assert ys2[g].dtype == jnp.bfloat16
        ok &= bool(jnp.allclose(ys2[g].astype(jnp.float32),
                                ref.astype(jnp.float32), atol=2e-2, rtol=2e-2))

    # --- Test 3: forced K-tiled path, multi m-tiles per group, N tiling ------
    k_mod3, k_c, k_d, k_e, key = jax.random.split(key, 5)
    g3, K3, N3 = 3, 512, 256
    mod3 = GroupColumnParallelLinearDeepSeekV3(
        g3, K3, N3, has_bias=True, key=k_mod3,
        tile_overrides=dict(tm=32, tn=128, tk=128))   # exercise the K-grid kernel
    xc = jax.random.normal(k_c, (80, K3), jnp.float32).astype(jnp.bfloat16)
    xd = jax.random.normal(k_d, (48, K3), jnp.float32).astype(jnp.bfloat16)
    xe = jax.random.normal(k_e, (16, K3), jnp.float32).astype(jnp.bfloat16)
    xs3 = [xc, xd, xe]
    ys3 = [jax.block_until_ready(y) for y in mod3(xs3)]
    for g in range(g3):
        ref = _reference(xs3[g], mod3.weight[g], mod3.bias[g])
        assert ys3[g].shape == xs3[g].shape[:-1] + (N3,)
        ok &= bool(jnp.allclose(ys3[g].astype(jnp.float32),
                                ref.astype(jnp.float32), atol=2e-2, rtol=2e-2))

    if ok:
        print("KERNEL_OK")
    else:
        print("MISMATCH")
</pallas_src>

<mosaic_0001>
module attributes {stable_mosaic.version = 11 : i64} {
  func.func @_gemm_kernel_single(%arg0: i32, %arg1: i32, %arg2: memref<2xi32, #tpu.memory_space<smem>>, %arg3: memref<8x256xbf16, #tpu.memory_space<vmem>>, %arg4: memref<1x256x128xbf16, #tpu.memory_space<vmem>>, %arg5: memref<1x1x128xbf16, #tpu.memory_space<vmem>>, %arg6: memref<8x128xbf16, #tpu.memory_space<vmem>>) attributes {dimension_semantics = [#tpu.dimension_semantics<parallel>, #tpu.dimension_semantics<parallel>], iteration_bounds = array<i64: 2, 1>, scalar_prefetch = 1 : i64, scratch_operands = 0 : i64, tpu.core_type = #tpu.core_type<tc>, window_params = [{transform_indices = @transform_0, window_bounds = array<i64: 8, 256>}, {transform_indices = @transform_1, window_bounds = array<i64: 1, 256, 128>}, {transform_indices = @transform_2, window_bounds = array<i64: 1, 1, 128>}, {transform_indices = @transform_3, window_bounds = array<i64: 8, 128>}]} {
    %c0 = arith.constant 0 : index
    %c0_0 = arith.constant 0 : index
    %0 = vector.load %arg3[%c0, %c0_0] : memref<8x256xbf16, #tpu.memory_space<vmem>>, vector<8x256xbf16>
    %c0_1 = arith.constant 0 : index
    %c0_2 = arith.constant 0 : index
    %c0_3 = arith.constant 0 : index
    %1 = vector.load %arg4[%c0_1, %c0_2, %c0_3] : memref<1x256x128xbf16, #tpu.memory_space<vmem>>, vector<1x256x128xbf16>
    %2 = vector.shape_cast %1 : vector<1x256x128xbf16> to vector<256x128xbf16>
    %cst = arith.constant dense<0.000000e+00> : vector<8x128xf32>
    %3 = tpu.matmul %0, %2, %cst {dimension_numbers = #tpu.dot_dimension_numbers<[1], [0], [0], [1], [0, 0, 1, 1], [], []>} : vector<8x256xbf16>, vector<256x128xbf16>, vector<8x128xf32> -> vector<8x128xf32>
    %c0_4 = arith.constant 0 : index
    %c0_5 = arith.constant 0 : index
    %c0_6 = arith.constant 0 : index
    %4 = vector.load %arg5[%c0_4, %c0_5, %c0_6] : memref<1x1x128xbf16, #tpu.memory_space<vmem>>, vector<1x1x128xbf16>
    %5 = vector.shape_cast %4 : vector<1x1x128xbf16> to vector<1x128xbf16>
    %6 = arith.extf %5 : vector<1x128xbf16> to vector<1x128xf32>
    %7 = vector.broadcast %6 : vector<1x128xf32> to vector<8x128xf32>
    %8 = arith.addf %3, %7 : vector<8x128xf32>
    %9 = arith.truncf %8 : vector<8x128xf32> to vector<8x128xbf16>
    %c0_7 = arith.constant 0 : index
    %c0_8 = arith.constant 0 : index
    %10 = vector.load %arg6[%c0_7, %c0_8] : memref<8x128xbf16, #tpu.memory_space<vmem>>, vector<8x128xbf16>
    tpu.vector_store %arg6[%c0_7, %c0_8], %9 {strides = array<i32>} : memref<8x128xbf16, #tpu.memory_space<vmem>>, vector<8x128xbf16>,
    return
  }
  func.func @transform_0(%arg0: i32, %arg1: i32, %arg2: memref<2xi32, #tpu.memory_space<smem>>) -> (i32, i32) {
    %c0_i32 = arith.constant 0 : i32
    %c0_i32_0 = arith.constant 0 : i32
    return %arg0, %c0_i32 : i32, i32
  }
  func.func @transform_1(%arg0: i32, %arg1: i32, %arg2: memref<2xi32, #tpu.memory_space<smem>>) -> (i32, i32, i32) {
    %0 = arith.index_cast %arg0 : i32 to index
    %1 = memref.load %arg2[%0] : memref<2xi32, #tpu.memory_space<smem>>
    %c0_i32 = arith.constant 0 : i32
    %c0_i32_0 = arith.constant 0 : i32
    return %1, %c0_i32, %arg1 : i32, i32, i32
  }
  func.func @transform_2(%arg0: i32, %arg1: i32, %arg2: memref<2xi32, #tpu.memory_space<smem>>) -> (i32, i32, i32) {
    %0 = arith.index_cast %arg0 : i32 to index
    %1 = memref.load %arg2[%0] : memref<2xi32, #tpu.memory_space<smem>>
    %c0_i32 = arith.constant 0 : i32
    %c0_i32_0 = arith.constant 0 : i32
    return %1, %c0_i32, %arg1 : i32, i32, i32
  }
  func.func @transform_3(%arg0: i32, %arg1: i32, %arg2: memref<2xi32, #tpu.memory_space<smem>>) -> (i32, i32) {
    %c0_i32 = arith.constant 0 : i32
    return %arg0, %arg1 : i32, i32
  }
}

</mosaic_0001>

<llo_original>
// kernel: _grouped_linear_pallas.1
$region0: #{_grouped_linear_pallas.1}
  #allocation0 [shape = 'u32[]', space=smem, size = 0x4, offset = 0x4, fixed_abs, tag = 'smem constant byte address 0x4 - core index']
  #allocation1 [shape = 'u32[72,128]{1,0:T(1,128)}', space=vmem, size = 0x9000, scoped, tag = 'internal scratch']
  #allocation2 [shape = 's32[1]{0}', space=sflag, size = 0x4, scoped, tag = 'scoped memory for _grouped_linear_pallas.1']
  #allocation3 [shape = 'u8[512]{0}', space=smem, size = 0x200, scoped, tag = 'prefetched SMEM operand 0']
  %s0 = inlined_call_operand.vmem [shape: s32[2], index: 0, kind: input, shape index: {}]
  %s1 = inlined_call_operand.vmem [shape: bf16[16,256], index: 1, kind: input, shape index: {}]
  %s2 = inlined_call_operand.hbm [shape: bf16[2,256,128], index: 2, kind: input, shape index: {}]
  %s3 = inlined_call_operand.vmem [shape: bf16[2,1,128], index: 3, kind: input, shape index: {}]
  %s4 = inlined_call_operand.hbm [shape: bf16[16,128], index: 4, kind: output, shape index: {}]
  %s5 = sld [smem:[#allocation0]]
  $region49: #{_grouped_linear_pallas.1} parent=0
    _
  %s7 = ssub.s32 1, %s5
  %s8 = scalar_select 0, %s7, %s5
  %s10 = sshll.u32 %s0, 4
  %s11 = int_to_ptr.vmem [resolvable:$true] %s10
  %13 = dma.vmem_to_smem %s11, 16, [#allocation3], [#allocation2]
  %15 = dma.done [#allocation2], 16
  %16 = sfence
  $region1: #{_grouped_linear_pallas.1} parent=0
    #allocation4 [shape = 'u8[131072]{0}', space=vmem, size = 0x20000, scoped, tag = 'input window, operand 2']
    #allocation5 [shape = 's32[2]{0}', space=sflag, size = 0x8, scoped, tag = 'scoped memory for _grouped_linear_pallas.1']
    #allocation6 [shape = 's32[2]{0}', space=sflag, size = 0x8, scoped, tag = 'scoped memory for _grouped_linear_pallas.1']
    #allocation7 [shape = 'u8[4096]{0}', space=vmem, size = 0x1000, scoped, tag = 'output window, operand 0']
    %17 = vsyncpa [#allocation5], 0
    %s18 = scalar_lea.sflag [#allocation5], 1
    %19 = vsyncpa %s18, 0
    %20 = vsyncpa [#allocation6], 0
    %s21 = scalar_lea.sflag [#allocation6], 1
    %22 = vsyncpa %s21, 0
    loop: start=0, step=1, limit=4
    $region2: #{_grouped_linear_pallas.1} parent=1 // loop_pre_header
      _
    $region3: #{_grouped_linear_pallas.1} parent=1 // loop_header
      %s24 = sphi 0, %s28
      %p25 = scmp.ge.s32.totalorder %s24, 4
      %s31 = sphi 0, %s43
      %s32 = sphi 0, %s39
      %s33 = sphi 0, %s31
      %s34 = sphi 0, %s32
      %s35 = sphi 0, %s33
      %s36 = sphi 0, %s34
      %s46 = sphi 0, %s48
      %s49 = sphi 0, %s46
      %s50 = sphi 0, %s49
      %s66 = sphi 0, %s50
      %s76 = sphi 0, %s78
      %s79 = sphi 0, %s76
      %s80 = sphi 0, %s79
      %s96 = sphi 0, %s80
      %s106 = sphi 0, %s108
      %s109 = sphi 0, %s106
      %s110 = sphi 0, %s109
      %s126 = sphi 0, %s110
      %s134 = sphi 0, %s136
      %s137 = sphi 0, %s134
      %s138 = sphi 0, %s137
      %s154 = sphi 0, %s138
    $region4: #{_grouped_linear_pallas.1} parent=1 // loop_header_branch
      %27 = sbr.rel (%p25) target = $region8
    $region5: #{_grouped_linear_pallas.1} parent=1 // loop_body
      %s29 = ssub.s32 %s24, 1
      %s30 = ssub.s32 %s24, 2
      %s37 = sadd.s32 1, %s32
      %p38 = scmp.ge.s32.totalorder %s37, 1
      %s39 = scalar_select %p38, 0, %s37
      %s40 = sadd.s32 1, %s31
      %s41 = scalar_select %p38, %s40, %s31
      %p42 = scmp.ge.s32.totalorder %s41, 2
      %s43 = scalar_select %p42, 0, %s41
      %s44 = ssub.s32 %s31, %s43
      %p45 = scmp.eq.s32.totalorder %s44, 0
      %s47 = sadd.s32 %s46, 1
      %s48 = scalar_select %p45, %s46, %s47
      %p51 = pneg %p45
      %p52 = scmp.eq.s32.totalorder %s24, 1
      %p53 = por %p51, %p52
      %p54 = scmp.ne.s32.totalorder %s46, %s49
      %p55 = scmp.eq.s32.totalorder %s24, 0
      %p56 = por %p54, %p55
      %p57 = scmp.ne.s32.totalorder %s46, %s49
      %p58 = scmp.eq.s32.totalorder %s29, 1
      %p59 = por %p57, %p58
      %p60 = scmp.ne.s32.totalorder %s49, %s50
      %p61 = scmp.eq.s32.totalorder %s29, 0
      %p62 = por %p60, %p61
      %p63 = scmp.ne.s32.totalorder %s49, %s50
      %p64 = scmp.eq.s32.totalorder %s30, 1
      %p65 = por %p63, %p64
      %p67 = scmp.ne.s32.totalorder %s50, %s66
      %p68 = scmp.eq.s32.totalorder %s30, 0
      %p69 = por %p67, %p68
      %s70 = sld [smem:[#allocation3 + %s31]]
      %s71 = sld [smem:[#allocation3 + %s43]]
      %s72 = ssub.s32 %s70, %s71
      %s73 = ssub.s32 %s32, %s39
      %s74 = sor.u32 %s72, %s73
      %p75 = scmp.eq.s32.totalorder %s74, 0
      %s77 = sadd.s32 %s76, 1
      %s78 = scalar_select %p75, %s76, %s77
      %p81 = pneg %p75
      %p82 = scmp.eq.s32.totalorder %s24, 1
      %p83 = por %p81, %p82
      %p84 = scmp.ne.s32.totalorder %s76, %s79
      %p85 = scmp.eq.s32.totalorder %s24, 0
      %p86 = por %p84, %p85
      %p87 = scmp.ne.s32.totalorder %s76, %s79
      %p88 = scmp.eq.s32.totalorder %s29, 1
      %p89 = por %p87, %p88
      %p90 = scmp.ne.s32.totalorder %s79, %s80
      %p91 = scmp.eq.s32.totalorder %s29, 0
      %p92 = por %p90, %p91
      %p93 = scmp.ne.s32.totalorder %s79, %s80
      %p94 = scmp.eq.s32.totalorder %s30, 1
      %p95 = por %p93, %p94
      %p97 = scmp.ne.s32.totalorder %s80, %s96
      %p98 = scmp.eq.s32.totalorder %s30, 0
      %p99 = por %p97, %p98
      %s100 = sld [smem:[#allocation3 + %s31]]
      %s101 = sld [smem:[#allocation3 + %s43]]
      %s102 = ssub.s32 %s100, %s101
      %s103 = ssub.s32 %s32, %s39
      %s104 = sor.u32 %s102, %s103
      %p105 = scmp.eq.s32.totalorder %s104, 0
      %s107 = sadd.s32 %s106, 1
      %s108 = scalar_select %p105, %s106, %s107
      %p111 = pneg %p105
      %p112 = scmp.eq.s32.totalorder %s24, 1
      %p113 = por %p111, %p112
      %p114 = scmp.ne.s32.totalorder %s106, %s109
      %p115 = scmp.eq.s32.totalorder %s24, 0
      %p116 = por %p114, %p115
      %p117 = scmp.ne.s32.totalorder %s106, %s109
      %p118 = scmp.eq.s32.totalorder %s29, 1
      %p119 = por %p117, %p118
      %p120 = scmp.ne.s32.totalorder %s109, %s110
      %p121 = scmp.eq.s32.totalorder %s29, 0
      %p122 = por %p120, %p121
      %p123 = scmp.ne.s32.totalorder %s109, %s110
      %p124 = scmp.eq.s32.totalorder %s30, 1
      %p125 = por %p123, %p124
      %p127 = scmp.ne.s32.totalorder %s110, %s126
      %p128 = scmp.eq.s32.totalorder %s30, 0
      %p129 = por %p127, %p128
      %s130 = ssub.s32 %s31, %s43
      %s131 = ssub.s32 %s32, %s39
      %s132 = sor.u32 %s130, %s131
      %p133 = scmp.eq.s32.totalorder %s132, 0
      %s135 = sadd.s32 %s134, 1
      %s136 = scalar_select %p133, %s134, %s135
      %p139 = pneg %p133
      %p140 = scmp.eq.s32.totalorder %s24, 1
      %p141 = por %p139, %p140
      %p142 = scmp.ne.s32.totalorder %s134, %s137
      %p143 = scmp.eq.s32.totalorder %s24, 0
      %p144 = por %p142, %p143
      %p145 = scmp.ne.s32.totalorder %s134, %s137
      %p146 = scmp.eq.s32.totalorder %s29, 1
      %p147 = por %p145, %p146
      %p148 = scmp.ne.s32.totalorder %s137, %s138
      %p149 = scmp.eq.s32.totalorder %s29, 0
      %p150 = por %p148, %p149
      %p151 = scmp.ne.s32.totalorder %s137, %s138
      %p152 = scmp.eq.s32.totalorder %s30, 1
      %p153 = por %p151, %p152
      %p155 = scmp.ne.s32.totalorder %s138, %s154
      %p156 = scmp.eq.s32.totalorder %s30, 0
      %p157 = por %p155, %p156
      %p158 = scmp.le.s32.totalorder 1, %s24
      %p159 = scmp.lt.s32.totalorder %s24, 3
      %p160 = pnand %p158, %p159
      %p161 = pneg %p160
      // Predicated region
      $region9: #{_grouped_linear_pallas.1} parent=5 // pred_check
        _
      $region10: #{_grouped_linear_pallas.1} parent=5 // pred_check_branch
        %163 = sbr.rel (%p160) target = $region12
      $region11: #{_grouped_linear_pallas.1} parent=5 // pred_region
        %s164 = ssub.s32 %s24, 1
      $region12: #{_grouped_linear_pallas.1} parent=5 // pred_fallthru
        _
      %p165 = scmp.lt.s32.totalorder %s24, 2
      // Predicated region
      $region13: #{_grouped_linear_pallas.1} parent=5 // pred_check
        %p166 = pneg %p165
      $region14: #{_grouped_linear_pallas.1} parent=5 // pred_check_branch
        %168 = sbr.rel (%p166) target = $region16
      $region15: #{_grouped_linear_pallas.1} parent=5 // pred_region
        // Predicated region
        $region17: #{_grouped_linear_pallas.1} parent=15 // pred_check
          %p169 = pneg %p56
        $region18: #{_grouped_linear_pallas.1} parent=15 // pred_check_branch
          %171 = sbr.rel (%p169) target = $region20
        $region19: #{_grouped_linear_pallas.1} parent=15 // pred_region
          %p172 = scmp.lt.s32.totalorder %s31, 1
          %s173 = scalar_select %p172, %s31, 1
          %s174 = smul.addr %s173, 2
          %s175 = smul.addr %s174, 4
          %s176 = scalar_lea.vmem %s1, %s175
        $region20: #{_grouped_linear_pallas.1} parent=15 // pred_fallthru
          _
        // Predicated region
        $region21: #{_grouped_linear_pallas.1} parent=15 // pred_check
          %p177 = pneg %p86
        $region22: #{_grouped_linear_pallas.1} parent=15 // pred_check_branch
          %179 = sbr.rel (%p177) target = $region24
        $region23: #{_grouped_linear_pallas.1} parent=15 // pred_region
          %s180 = sand.u32 %s76, 1
          %s181 = scalar_lea.sflag [#allocation5], %s180
          %s182 = sand.u32 %s76, 1
          %s183 = smul.addr %s182, 128
          %s184 = scalar_lea.vmem [#allocation4], %s183
          %s185 = sld [smem:[#allocation3 + %s31]]
          %187 = vsyncadd %s181, 0
          %s188 = smul.addr %s185, 32
          %s189 = sadd.s32 %s32, %s188
          %s190 = smul.addr %s189, 4
          %s191 = scalar_lea.hbm %s2, %s190
          %s192 = sshll.u32 %s191, 4
          %s193 = int_to_ptr.hbm [resolvable:$true] %s192
          %s194 = sshll.u32 %s184, 4
          %s195 = int_to_ptr.vmem [resolvable:$true] %s194
          %200 = dma.hbm_to_vmem [thread:$0]  %s193, 2048, %s195, %s181, 64, 64, 4
        $region24: #{_grouped_linear_pallas.1} parent=15 // pred_fallthru
          _
        // Predicated region
        $region25: #{_grouped_linear_pallas.1} parent=15 // pred_check
          %p201 = pneg %p116
        $region26: #{_grouped_linear_pallas.1} parent=15 // pred_check_branch
          %203 = sbr.rel (%p201) target = $region28
        $region27: #{_grouped_linear_pallas.1} parent=15 // pred_region
          %s204 = sld [smem:[#allocation3 + %s31]]
          %p205 = scmp.lt.s32.totalorder %s204, 1
          %s206 = scalar_select %p205, %s204, 1
          %p207 = scmp.lt.s32.totalorder %s32, 0
          %s208 = scalar_select %p207, %s32, 0
          %s209 = sadd.s32 %s208, %s206
          %s210 = scalar_lea.vmem %s3, %s209
          %s211 = sld [smem:[#allocation3 + %s31]]
        $region28: #{_grouped_linear_pallas.1} parent=15 // pred_fallthru
          _
      $region16: #{_grouped_linear_pallas.1} parent=5 // pred_fallthru
        _
      %p212 = scmp.le.s32.totalorder 1, %s24
      %p213 = scmp.lt.s32.totalorder %s24, 3
      %p214 = pnand %p212, %p213
      %p215 = pneg %p214
      // Predicated region
      $region29: #{_grouped_linear_pallas.1} parent=5 // pred_check
        _
      $region30: #{_grouped_linear_pallas.1} parent=5 // pred_check_branch
        %217 = sbr.rel (%p214) target = $region32
      $region31: #{_grouped_linear_pallas.1} parent=5 // pred_region
        %s218 = ssub.s32 %s24, 1
        %s219 = sand.u32 %s79, 1
        %s220 = scalar_lea.sflag [#allocation5], %s219
        %s221 = sand.u32 %s79, 1
        %s222 = smul.addr %s221, 128
        %s223 = scalar_lea.vmem [#allocation4], %s222
        // Predicated region
        $region33: #{_grouped_linear_pallas.1} parent=31 // pred_check
          %p224 = pneg %p92
        $region34: #{_grouped_linear_pallas.1} parent=31 // pred_check_branch
          %226 = sbr.rel (%p224) target = $region36
        $region35: #{_grouped_linear_pallas.1} parent=31 // pred_region
          %228 = dma.done %s220, 2048
        $region36: #{_grouped_linear_pallas.1} parent=31 // pred_fallthru
          _
        %p229 = scmp.lt.s32.totalorder %s33, 1
        %s230 = scalar_select %p229, %s33, 1
        %s231 = smul.addr %s230, 2
        %s232 = smul.addr %s231, 4
        %s233 = scalar_lea.vmem %s1, %s232
        %p234 = pneg %p62
        %p235 = pneg %p59
        %s236 = sand.u32 %s79, 1
        %s237 = scalar_lea.sflag [#allocation5], %s236
        %s238 = sand.u32 %s79, 1
        %s239 = smul.addr %s238, 128
        %s240 = scalar_lea.vmem [#allocation4], %s239
        %p241 = pneg %p92
        %p242 = pneg %p89
        %s243 = sld [smem:[#allocation3 + %s33]]
        %p244 = scmp.lt.s32.totalorder %s243, 1
        %s245 = scalar_select %p244, %s243, 1
        %p246 = scmp.lt.s32.totalorder %s34, 0
        %s247 = scalar_select %p246, %s34, 0
        %s248 = sadd.s32 %s247, %s245
        %s249 = scalar_lea.vmem %s3, %s248
        %p250 = pneg %p122
        %p251 = pneg %p119
        %p252 = pneg %p150
        %p253 = pneg %p147
        %s254 = sand.u32 %s137, 1
        %s255 = scalar_lea.sflag [#allocation6], %s254
        %s256 = sand.u32 %s137, 1
        %s257 = smul.addr %s256, 4
        %s258 = scalar_lea.vmem [#allocation7], %s257
        %p259 = scmp.lt.s32.totalorder %s33, 1
        %s260 = scalar_select %p259, %s33, 1
        %s261 = smul.addr %s260, 2
        %s262 = smul.addr %s261, 4
        %s263 = scalar_lea.vmem %s1, %s262
        %s264 = sld [smem:[#allocation3 + %s33]]
        %s265 = sld [smem:[#allocation3 + %s33]]
        %p266 = scmp.lt.s32.totalorder %s265, 1
        %s267 = scalar_select %p266, %s265, 1
        %p268 = scmp.lt.s32.totalorder %s34, 0
        %s269 = scalar_select %p268, %s34, 0
        %s270 = sadd.s32 %s269, %s267
        %s271 = scalar_lea.vmem %s3, %s270
        %s272 = sld [smem:[#allocation3 + %s33]]
        %v273 = vld [vmem:[%s263] sm:$0xff]
        %v274 = vld [vmem:[%s223] sm:$0xf]
        %v275 = vld [vmem:[%s223 + $0x4] sm:$0xf]
        %v276 = vld [vmem:[%s223 + $0x8] sm:$0xf]
        %v277 = vld [vmem:[%s223 + $0xc] sm:$0xf]
        %v278 = vld [vmem:[%s223 + $0x10] sm:$0xf]
        %v279 = vld [vmem:[%s223 + $0x14] sm:$0xf]
        %v280 = vld [vmem:[%s223 + $0x18] sm:$0xf]
        %v281 = vld [vmem:[%s223 + $0x1c] sm:$0xf]
        %v282 = vld [vmem:[%s223 + $0x20] sm:$0xf]
        %v283 = vld [vmem:[%s223 + $0x24] sm:$0xf]
        %v284 = vld [vmem:[%s223 + $0x28] sm:$0xf]
        %v285 = vld [vmem:[%s223 + $0x2c] sm:$0xf]
        %v286 = vld [vmem:[%s223 + $0x30] sm:$0xf]
        %v287 = vld [vmem:[%s223 + $0x34] sm:$0xf]
        %v288 = vld [vmem:[%s223 + $0x38] sm:$0xf]
        %v289 = vld [vmem:[%s223 + $0x3c] sm:$0xf]
        %v290 = vld [vmem:[%s223 + $0x40] sm:$0xf]
        %v291 = vld [vmem:[%s223 + $0x44] sm:$0xf]
        %v292 = vld [vmem:[%s223 + $0x48] sm:$0xf]
        %v293 = vld [vmem:[%s223 + $0x4c] sm:$0xf]
        %v294 = vld [vmem:[%s223 + $0x50] sm:$0xf]
        %v295 = vld [vmem:[%s223 + $0x54] sm:$0xf]
        %v296 = vld [vmem:[%s223 + $0x58] sm:$0xf]
        %v297 = vld [vmem:[%s223 + $0x5c] sm:$0xf]
        %v298 = vld [vmem:[%s223 + $0x60] sm:$0xf]
        %v299 = vld [vmem:[%s223 + $0x64] sm:$0xf]
        %v300 = vld [vmem:[%s223 + $0x68] sm:$0xf]
        %v301 = vld [vmem:[%s223 + $0x6c] sm:$0xf]
        %v302 = vld [vmem:[%s223 + $0x70] sm:$0xf]
        %v303 = vld [vmem:[%s223 + $0x74] sm:$0xf]
        %v304 = vld [vmem:[%s223 + $0x78] sm:$0xf]
        %v305 = vld [vmem:[%s223 + $0x7c] sm:$0xf]
        %v306 = vld [vmem:[%s271] sm:$0x1]
        %v307 = vunpack.c.l.bf16 %v306
        %v308 = vperm.slane %v307, 0
        %v310 = vunpack.c.l.b16 %v273
        %v311 = vunpack.c.h.b16 %v273
        %v312 = vpack.c.b16 %v310, %v310
        %v313 = vpack.c.b16 %v311, %v311
        %v348 = vunpack.c.l.b16 %v274
        %v349 = vunpack.c.l.b16 %v275
        %v350 = vunpack.c.l.b16 %v276
        %v351 = vunpack.c.l.b16 %v277
        %v352 = vunpack.c.l.b16 %v278
        %v353 = vunpack.c.l.b16 %v279
        %v354 = vunpack.c.l.b16 %v280
        %v355 = vunpack.c.l.b16 %v281
        %v356 = vunpack.c.l.b16 %v282
        %v357 = vunpack.c.l.b16 %v283
        %v358 = vunpack.c.l.b16 %v284
        %v359 = vunpack.c.l.b16 %v285
        %v360 = vunpack.c.l.b16 %v286
        %v361 = vunpack.c.l.b16 %v287
        %v362 = vunpack.c.l.b16 %v288
        %v363 = vunpack.c.l.b16 %v289
        %v364 = vunpack.c.l.b16 %v290
        %v365 = vunpack.c.l.b16 %v291
        %v366 = vunpack.c.l.b16 %v292
        %v367 = vunpack.c.l.b16 %v293
        %v368 = vunpack.c.l.b16 %v294
        %v369 = vunpack.c.l.b16 %v295
        %v370 = vunpack.c.l.b16 %v296
        %v371 = vunpack.c.l.b16 %v297
        %v372 = vunpack.c.l.b16 %v298
        %v373 = vunpack.c.l.b16 %v299
        %v374 = vunpack.c.l.b16 %v300
        %v375 = vunpack.c.l.b16 %v301
        %v376 = vunpack.c.l.b16 %v302
        %v377 = vunpack.c.l.b16 %v303
        %v378 = vunpack.c.l.b16 %v304
        %v379 = vunpack.c.l.b16 %v305
        %v380 = vpack.c.b16 %v349, %v348
        %v381 = vpack.c.b16 %v351, %v350
        %v382 = vpack.c.b16 %v353, %v352
        %v383 = vpack.c.b16 %v355, %v354
        %v384 = vpack.c.b16 %v357, %v356
        %v385 = vpack.c.b16 %v359, %v358
        %v386 = vpack.c.b16 %v361, %v360
        %v387 = vpack.c.b16 %v363, %v362
        %v388 = vpack.c.b16 %v365, %v364
        %v389 = vpack.c.b16 %v367, %v366
        %v390 = vpack.c.b16 %v369, %v368
        %v391 = vpack.c.b16 %v371, %v370
        %v392 = vpack.c.b16 %v373, %v372
        %v393 = vpack.c.b16 %v375, %v374
        %v394 = vpack.c.b16 %v377, %v376
        %v395 = vpack.c.b16 %v379, %v378
        %412 = vmatpush.bf16.msra.mxu0 %v387
        %413 = vmatpush.bf16.msra.mxu0 %v386
        %414 = vmatpush.bf16.msra.mxu0 %v385
        %415 = vmatpush.bf16.msra.mxu0 %v384
        %416 = vmatpush.bf16.msra.mxu0 %v383
        %417 = vmatpush.bf16.msra.mxu0 %v382
        %418 = vmatpush.bf16.msra.mxu0 %v381
        %419 = vmatpush.bf16.msra.mxu0 %v380
        %420 = vmatmul.bf16.gmra.mxu0 %v312
        %v421 = vpop.f32.mrf.mxu0
        %v422 = vadd.f32 %v308, %v421
        %v423 = vpop.f32.mrf.mxu0
        %424 = vdwg.mxu0
        %425 = vmatpush.bf16.msra.mxu0 %v395
        %426 = vmatpush.bf16.msra.mxu0 %v394
        %427 = vmatpush.bf16.msra.mxu0 %v393
        %428 = vmatpush.bf16.msra.mxu0 %v392
        %429 = vmatpush.bf16.msra.mxu0 %v391
        %430 = vmatpush.bf16.msra.mxu0 %v390
        %431 = vmatpush.bf16.msra.mxu0 %v389
        %432 = vmatpush.bf16.msra.mxu0 %v388
        %433 = vmatmul.bf16.gmra.mxu0 %v313
        %v434 = vpop.f32.mrf.mxu0
        %v435 = vadd.f32 %v422, %v434
        %v436 = vpop.f32.mrf.mxu0
        %437 = vdwg.mxu0
        %v438 = vpack.c.bf16 %v435, %v435
        %439 = vst [vmem:[%s258] sm:$0xf] %v438
        %s440 = sand.u32 %s137, 1
        %s441 = scalar_lea.sflag [#allocation6], %s440
        %s442 = sand.u32 %s137, 1
        %s443 = smul.addr %s442, 4
        %s444 = scalar_lea.vmem [#allocation7], %s443
        // Predicated region
        $region37: #{_grouped_linear_pallas.1} parent=31 // pred_check
          %p445 = pneg %p147
        $region38: #{_grouped_linear_pallas.1} parent=31 // pred_check_branch
          %447 = sbr.rel (%p445) target = $region40
        $region39: #{_grouped_linear_pallas.1} parent=31 // pred_region
          %449 = vsyncadd %s441, 0
          %s450 = sadd.s32 %s34, %s33
          %s451 = smul.addr %s450, 4
          %s452 = scalar_lea.hbm %s4, %s451
          %s454 = sshll.u32 %s444, 4
          %s455 = int_to_ptr.vmem [resolvable:$true] %s454
          %s456 = sshll.u32 %s452, 4
          %s457 = int_to_ptr.hbm [resolvable:$true] %s456
          %459 = dma.vmem_to_hbm [thread:$0]  %s455, 64, %s457, %s441
        $region40: #{_grouped_linear_pallas.1} parent=31 // pred_fallthru
          _
      $region32: #{_grouped_linear_pallas.1} parent=5 // pred_fallthru
        _
      %p460 = scmp.le.s32.totalorder 2, %s24
      // Predicated region
      $region41: #{_grouped_linear_pallas.1} parent=5 // pred_check
        %p461 = pneg %p460
      $region42: #{_grouped_linear_pallas.1} parent=5 // pred_check_branch
        %463 = sbr.rel (%p461) target = $region44
      $region43: #{_grouped_linear_pallas.1} parent=5 // pred_region
        %s464 = ssub.s32 %s24, 2
        // Predicated region
        $region45: #{_grouped_linear_pallas.1} parent=43 // pred_check
          %p465 = pneg %p153
        $region46: #{_grouped_linear_pallas.1} parent=43 // pred_check_branch
          %467 = sbr.rel (%p465) target = $region48
        $region47: #{_grouped_linear_pallas.1} parent=43 // pred_region
          %s468 = sand.u32 %s138, 1
          %s469 = scalar_lea.sflag [#allocation6], %s468
          %s470 = sand.u32 %s138, 1
          %s471 = smul.addr %s470, 4
          %s472 = scalar_lea.vmem [#allocation7], %s471
          %474 = dma.done %s469, 64
        $region48: #{_grouped_linear_pallas.1} parent=43 // pred_fallthru
          _
      $region44: #{_grouped_linear_pallas.1} parent=5 // pred_fallthru
        _
    $region6: #{_grouped_linear_pallas.1} parent=1 // loop_footer
      %s28 = sadd.s32 1, %s24
    $region7: #{_grouped_linear_pallas.1} parent=1 // loop_footer_branch
      %23 = sbr.rel target = $region3
    $region8: #{_grouped_linear_pallas.1} parent=1 // loop_exit
      _
    %475 = vsyncpa [#allocation5], 1
    %s476 = scalar_lea.sflag [#allocation5], 1
    %477 = vsyncpa %s476, 1
    %478 = vsyncpa [#allocation6], 1
    %s479 = scalar_lea.sflag [#allocation6], 1
    %480 = vsyncpa %s479, 1

</llo_original>
